<compile_context>
chip_gen: v6e
topology: v6e:2x2x1
jax: 0.10.0
libtpu: 0.0.40
codegen_flags: <defaults>
</compile_context>

<pallas_src>
import math

import jax
import jax.numpy as jnp
from jax.experimental import pallas as pl
from jax.experimental.pallas import tpu as pltpu

EPS = 1e-6
_MIB = 1024 * 1024


def _round_up(n, m):
    return ((n + m - 1) // m) * m


def _sublane_multiple(dtype):
    # f32 -> 8, bf16 -> 16, int8/fp8 -> 32
    return max(8, 32 // jnp.dtype(dtype).itemsize)


def _vmem_capacity_bytes():
    try:
        info = pltpu.get_tpu_info()
        cap = getattr(info, "vmem_capacity_bytes", None)
        if cap:
            return int(cap)
    except Exception:
        pass
    return 64 * _MIB  # conservative fallback (v7x-sized)


def _epilogue(y, p, dim_out, mod=None):
    """LayerNorm (unbiased std, /(std+eps)) -> optional scale/shift -> SiLU. All f32.

    y:   (tm, Dp)  f32 matmul accumulator; padded columns (if Dp > dim_out) are exactly 0
    p:   (3, Dp)   f32 packed [linear bias, LN gain a_2, LN bias b_2] (zero-padded)
    mod: (2, Dp)   f32 packed [scale, shift] (zero-padded) or None
    """
    bias = p[0:1, :]
    gain = p[1:2, :]
    lnb = p[2:3, :]

    y = y + bias                      # padded columns stay exactly 0 (bias zero-padded)
    dp_ = y.shape[-1]

    mean = jnp.sum(y, axis=-1, keepdims=True) * (1.0 / dim_out)
    cen = y - mean
    ss = jnp.sum(cen * cen, axis=-1, keepdims=True)
    if dp_ != dim_out:
        # Analytic correction: each of the (dp_ - dim_out) zero-padded columns contributes
        # exactly mean^2 to ss. Mathematically identical to masking, but no iota / selects.
        ss = ss - float(dp_ - dim_out) * (mean * mean)
    var_unbiased = ss * (1.0 / (dim_out - 1))
    inv = 1.0 / (jnp.sqrt(var_unbiased) + EPS)   # (tm, 1) per-row divide on VPU; negligible
    y = gain * (cen * inv) + lnb                 # padded columns -> 0 (gain/lnb zero-padded)

    if mod is not None:
        y = y * (mod[0:1, :] + 1.0) + mod[1:2, :]   # padded columns stay 0

    return y * jax.nn.sigmoid(y)  # SiLU


def _make_kernel(*, dim_out, compute_dtype, has_mod, k_axis, k_tiled):
    """Build the fused kernel for the chosen layout (with/without modulation, K tiling)."""

    def kernel(*refs):
        if has_mod:
            x_ref, w_ref, p_ref, m_ref = refs[:4]
            rest = refs[4:]
        else:
            x_ref, w_ref, p_ref = refs[:3]
            m_ref = None
            rest = refs[3:]
        o_ref = rest[0]
        acc_ref = rest[1] if k_tiled else None

        x = x_ref[0] if len(x_ref.shape) == 3 else x_ref[...]
        # Cast to the MXU compute dtype in VMEM (x is streamed at its native HBM dtype).
        part = jnp.dot(x.astype(compute_dtype), w_ref[...],
                       preferred_element_type=jnp.float32)

        def finish(y):
            mod = m_ref[0].astype(jnp.float32) if has_mod else None
            out = _epilogue(y, p_ref[...].astype(jnp.float32), dim_out, mod)
            if len(o_ref.shape) == 3:
                o_ref[0] = out.astype(o_ref.dtype)
            else:
                o_ref[...] = out.astype(o_ref.dtype)

        if not k_tiled:
            finish(part)
        else:
            k = pl.program_id(k_axis)

            @pl.when(k == 0)
            def _():
                acc_ref[...] = jnp.zeros_like(acc_ref)

            acc_ref[...] += part

            @pl.when(k == pl.num_programs(k_axis) - 1)
            def _():
                finish(acc_ref[...])

    return kernel


def block_forward(x, w, b, gamma, beta, scale_shift=None, *, tm=None, tk=None,
                  compute_dtype=jnp.bfloat16, out_dtype=None, interpret=False):
    """Fused Block forward.

    x: (..., dim); w: (dim, dim_out) (already Linear-weight^T); b/gamma/beta: (dim_out,).
    scale_shift: optional (scale, shift), each broadcastable to (B, 1, ..., 1, dim_out)
      where B = x.shape[0] (per-batch, per-feature modulation — the DDM time-embedding case).
    out_dtype: output dtype (defaults to x.dtype); pass bf16 to halve output HBM traffic.

    Note: the matmul runs in `compute_dtype` (bf16 by default) with f32 accumulation, so
    results deviate from an all-f32 reference by ~1e-2 relative.
    """
    assert x.ndim >= 2, "x must have a feature axis plus at least one leading axis"
    lead = x.shape[:-1]
    dim = x.shape[-1]
    assert w.shape[0] == dim
    dim_out = w.shape[1]
    assert dim_out >= 2, "unbiased std needs dim_out >= 2 (PyTorch would produce NaN)"

    out_dtype = jnp.dtype(out_dtype) if out_dtype is not None else jnp.dtype(x.dtype)
    comp_isize = jnp.dtype(compute_dtype).itemsize
    x_isize = jnp.dtype(x.dtype).itemsize
    o_isize = out_dtype.itemsize
    has_mod = scale_shift is not None

    if has_mod:
        batch = lead[0]
        rows = max(math.prod(lead[1:]), 1)
    else:
        batch = 1
        rows = max(math.prod(lead), 1)

    # Lane-pad the feature axis so stores are unmasked / lane-dense.
    dp = _round_up(dim_out, 128)

    # --- generation-aware VMEM budget ---
    vmem_cap = _vmem_capacity_bytes()
    vmem_limit = int(min(max(vmem_cap - 16 * _MIB, 32 * _MIB), 100 * _MIB))

    # --- K (reduction) tiling: only when the resident weight would be too large ---
    w_budget = max(4 * _MIB, vmem_limit // 4)
    if tk is None:
        tk = dim
        if dim * dp * comp_isize > w_budget and dim % 128 == 0:
            cand = [t for t in range(128, dim + 1, 128)
                    if dim % t == 0 and t * dp * comp_isize <= w_budget]
            if cand:
                tk = max(cand)
    assert dim % tk == 0, "tk must divide dim"
    assert tk == dim or tk % 128 == 0, "tk must be a multiple of 128 (or the full dim)"
    kt = dim // tk
    k_tiled = kt > 1

    # --- row tiling (generation-dependent default, shrunk to fit VMEM) ---
    row_mult = max(_sublane_multiple(x.dtype), _sublane_multiple(out_dtype))
    if tm is None:
        tm = 512 if vmem_cap >= 96 * _MIB else 256
    if rows <= row_mult:
        tm_eff = rows   # full-extent row block: always layout-legal
    else:
        tm_eff = min(_round_up(tm, row_mult), _round_up(rows, row_mult))

        def _fits(t):
            f = 2 * t * tk * x_isize                            # x (double-buffered)
            f += (1 if not k_tiled else 2) * tk * dp * comp_isize  # weight
            f += 2 * t * dp * o_isize                           # out (double-buffered)
            f += (t * dp * 4) if k_tiled else 0                 # f32 accumulator
            f += 2 * t * dp * 4                                 # epilogue f32 temporaries
            f += 5 * dp * 4                                     # params + modulation
            return f <= int(vmem_limit * 0.8)

        while tm_eff > row_mult and not _fits(tm_eff):
            tm_eff = max(row_mult, _round_up(tm_eff // 2, row_mult))
    n_row = pl.cdiv(rows, tm_eff)

    # --- operands (no extra HBM passes over x: no row padding, no dtype pre-cast) ---
    xk = x.reshape(batch, rows, dim) if has_mod else x.reshape(rows, dim)

    w_p = w
    if dp != dim_out:
        w_p = jnp.pad(w_p, ((0, 0), (0, dp - dim_out)))
    w_p = w_p.astype(compute_dtype)

    def _feat(v):
        v = v.reshape(1, dim_out).astype(jnp.float32)
        if dp != dim_out:
            v = jnp.pad(v, ((0, 0), (0, dp - dim_out)))
        return v

    params = jnp.concatenate([_feat(b), _feat(gamma), _feat(beta)], axis=0)  # (3, dp)

    inputs = [xk, w_p, params]
    if has_mod:
        scale, shift = scale_shift
        # Per-batch / per-feature modulation: broadcast_to is a shape *check* (it errors for
        # genuinely per-row modulation) and never materializes per-row data.
        bshape = (batch,) + (1,) * (len(lead) - 1) + (dim_out,)
        scale2 = jnp.broadcast_to(scale, bshape).reshape(batch, 1, dim_out).astype(jnp.float32)
        shift2 = jnp.broadcast_to(shift, bshape).reshape(batch, 1, dim_out).astype(jnp.float32)
        mod = jnp.concatenate([scale2, shift2], axis=1)  # (batch, 2, dim_out)
        if dp != dim_out:
            mod = jnp.pad(mod, ((0, 0), (0, 0), (0, dp - dim_out)))
        inputs.append(mod)

    # --- grid, index maps, semantics ---
    if has_mod:
        if k_tiled:
            grid = (batch, n_row, kt)
            sem = ("parallel", "parallel", "arbitrary")
            x_map = lambda bb, i, k: (bb, i, k)
            w_map = lambda bb, i, k: (k, 0)
            c_map = lambda bb, i, k: (0, 0)
            m_map = lambda bb, i, k: (bb, 0, 0)
            o_map = lambda bb, i, k: (bb, i, 0)
        else:
            grid = (batch, n_row)
            sem = ("parallel", "parallel")
            x_map = lambda bb, i: (bb, i, 0)
            w_map = lambda bb, i: (0, 0)
            c_map = lambda bb, i: (0, 0)
            m_map = lambda bb, i: (bb, 0, 0)
            o_map = lambda bb, i: (bb, i, 0)
        x_blk = (1, tm_eff, tk)
        o_blk = (1, tm_eff, dp)
        out_shape = jax.ShapeDtypeStruct((batch, rows, dp), out_dtype)
    else:
        if k_tiled:
            grid = (n_row, kt)
            sem = ("parallel", "arbitrary")
            x_map = lambda i, k: (i, k)
            w_map = lambda i, k: (k, 0)
            c_map = lambda i, k: (0, 0)
            o_map = lambda i, k: (i, 0)
        else:
            grid = (n_row,)
            sem = ("parallel",)
            x_map = lambda i: (i, 0)
            w_map = lambda i: (0, 0)
            c_map = lambda i: (0, 0)
            o_map = lambda i: (i, 0)
        m_map = None
        x_blk = (tm_eff, tk)
        o_blk = (tm_eff, dp)
        out_shape = jax.ShapeDtypeStruct((rows, dp), out_dtype)
    k_axis = len(grid) - 1

    def _spec(shape, index_map, *, single_buffer=False):
        # Grid-invariant inputs do not need double buffering; saves a full weight copy.
        if single_buffer and hasattr(pl, "Buffered"):
            try:
                return pl.BlockSpec(shape, index_map, pipeline_mode=pl.Buffered(1))
            except Exception:
                pass
        return pl.BlockSpec(shape, index_map)

    kernel = _make_kernel(dim_out=dim_out, compute_dtype=compute_dtype,
                          has_mod=has_mod, k_axis=k_axis, k_tiled=k_tiled)

    total_rows = batch * rows
    cost = pl.CostEstimate(
        flops=2 * total_rows * dim * dp,
        transcendentals=total_rows * dp,
        bytes_accessed=(total_rows * dim * x_isize + dim * dp * comp_isize
                        + total_rows * dp * o_isize + 5 * dp * 4),
    )

    def _run(single_buffer):
        w_single = single_buffer and not k_tiled  # weight is grid-invariant only without K tiling
        in_specs = [
            pl.BlockSpec(x_blk, x_map),
            _spec((tk, dp), w_map, single_buffer=w_single),
            _spec((3, dp), c_map, single_buffer=single_buffer),
        ]
        if has_mod:
            in_specs.append(pl.BlockSpec((1, 2, dp), m_map))
        scratch = [pltpu.VMEM((tm_eff, dp), jnp.float32)] if k_tiled else []

        return pl.pallas_call(
            kernel,
            out_shape=out_shape,
            grid_spec=pltpu.PrefetchScalarGridSpec(
                num_scalar_prefetch=0,
                grid=grid,
                in_specs=in_specs,
                out_specs=pl.BlockSpec(o_blk, o_map),
                scratch_shapes=scratch,
            ),
            compiler_params=pltpu.CompilerParams(
                dimension_semantics=sem,
                vmem_limit_bytes=vmem_limit,
            ),
            cost_estimate=cost,
            interpret=interpret,
        )(*inputs)

    try:
        out = _run(True)
    except Exception:
        # Fallback: retry with default (double) buffering if single-buffering is unsupported.
        out = _run(False)

    if dp != dim_out:
        out = out[..., :dim_out]
    return out.reshape(lead + (dim_out,))


def _reference(x, w, b, gamma, beta, scale_shift=None, *, compute_dtype=jnp.float32):
    """Pure-JAX reference matching the PyTorch module (unbiased std, /(std+eps))."""
    y = jnp.einsum("...d,de->...e", x.astype(compute_dtype), w.astype(compute_dtype),
                   preferred_element_type=jnp.float32) + b
    mean = jnp.mean(y, axis=-1, keepdims=True)
    std = jnp.sqrt(jnp.sum((y - mean) ** 2, axis=-1, keepdims=True) / (y.shape[-1] - 1))
    y = gamma * (y - mean) / (std + EPS) + beta
    if scale_shift is not None:
        s, t = scale_shift
        y = y * (s + 1.0) + t
    return y * jax.nn.sigmoid(y)


if __name__ == "__main__":
    def make_params(kp, dim, dim_out):
        k1, k2 = jax.random.split(kp)
        bound = 1.0 / math.sqrt(dim)
        w = jax.random.uniform(k1, (dim, dim_out), jnp.float32, -bound, bound)  # weight^T
        b = jax.random.uniform(k2, (dim_out,), jnp.float32, -bound, bound)      # Linear bias
        gamma = jnp.ones((dim_out,), jnp.float32)                                # LayerNorm a_2
        beta = jnp.zeros((dim_out,), jnp.float32)                                # LayerNorm b_2
        return w, b, gamma, beta

    key = jax.random.PRNGKey(0)
    k1, k2, k3, k4 = jax.random.split(key, 4)

    # --- Cases 1/2: dim=32 -> dim_out=32 (feature axis lane-padded to 128) ---
    B, S, dim, dim_out = 2, 8, 32, 32
    x = jax.random.normal(k1, (B, S, dim), dtype=jnp.float32)
    w, b, gamma, beta = make_params(k2, dim, dim_out)
    scale = jax.random.normal(k3, (B, 1, dim_out), jnp.float32) * 0.1
    shift = jax.random.normal(k4, (B, 1, dim_out), jnp.float32) * 0.1

    out0 = jax.block_until_ready(block_forward(x, w, b, gamma, beta, None))
    ref0 = _reference(x, w, b, gamma, beta, None, compute_dtype=jnp.bfloat16)
    assert out0.shape == (B, S, dim_out)
    assert jnp.allclose(out0, ref0, atol=1e-4, rtol=1e-4), "mismatch (no scale_shift)"
    ref0_f32 = _reference(x, w, b, gamma, beta, None, compute_dtype=jnp.float32)
    assert jnp.allclose(out0, ref0_f32, atol=6e-2, rtol=6e-2), "bf16 path far from f32 reference"

    out1 = jax.block_until_ready(block_forward(x, w, b, gamma, beta, (scale, shift)))
    ref1 = _reference(x, w, b, gamma, beta, (scale, shift), compute_dtype=jnp.bfloat16)
    assert out1.shape == (B, S, dim_out)
    assert jnp.allclose(out1, ref1, atol=1e-4, rtol=1e-4), "mismatch (scale_shift)"

    # bf16 output path (halved writeback)
    out1b = jax.block_until_ready(
        block_forward(x, w, b, gamma, beta, (scale, shift), out_dtype=jnp.bfloat16))
    assert out1b.dtype == jnp.bfloat16
    assert jnp.allclose(out1b.astype(jnp.float32), ref1, atol=2e-2, rtol=2e-2), \
        "mismatch (bf16 output)"

    # --- Cases 3/4: K-tiled path (forced tk=256), dim=512 -> dim_out=384 (no column pad) ---
    B2, S2, dim2, dim_out2 = 2, 8, 512, 384
    k5, k6, k7, k8 = jax.random.split(jax.random.PRNGKey(1), 4)
    x2 = jax.random.normal(k5, (B2, S2, dim2), dtype=jnp.float32)
    w2, b2, gamma2, beta2 = make_params(k6, dim2, dim_out2)
    scale2 = jax.random.normal(k7, (B2, 1, dim_out2), jnp.float32) * 0.1
    shift2 = jax.random.normal(k8, (B2, 1, dim_out2), jnp.float32) * 0.1

    out2 = jax.block_until_ready(block_forward(x2, w2, b2, gamma2, beta2, None, tk=256))
    ref2 = _reference(x2, w2, b2, gamma2, beta2, None, compute_dtype=jnp.bfloat16)
    assert out2.shape == (B2, S2, dim_out2)
    assert jnp.allclose(out2, ref2, atol=2e-3, rtol=2e-3), "mismatch (K-tiled, no scale_shift)"

    out3 = jax.block_until_ready(
        block_forward(x2, w2, b2, gamma2, beta2, (scale2, shift2), tk=256))
    ref3 = _reference(x2, w2, b2, gamma2, beta2, (scale2, shift2), compute_dtype=jnp.bfloat16)
    assert out3.shape == (B2, S2, dim_out2)
    assert jnp.allclose(out3, ref3, atol=2e-3, rtol=2e-3), "mismatch (K-tiled, scale_shift)"

    print("KERNEL_OK")
</pallas_src>

<mosaic_0001>
module attributes {stable_mosaic.version = 11 : i64} {
  func.func @kernel(%arg0: i32, %arg1: memref<16x32xf32, #tpu.memory_space<vmem>>, %arg2: memref<32x128xbf16, #tpu.memory_space<vmem>>, %arg3: memref<3x128xf32, #tpu.memory_space<vmem>>, %arg4: memref<16x128xf32, #tpu.memory_space<vmem>>) attributes {dimension_semantics = [#tpu.dimension_semantics<parallel>], iteration_bounds = array<i64: 1>, scalar_prefetch = 0 : i64, scratch_operands = 0 : i64, tpu.core_type = #tpu.core_type<tc>, window_params = [{transform_indices = @transform_0, window_bounds = array<i64: 16, 32>}, {pipeline_mode = #tpu.pipeline_mode<synchronous>, transform_indices = @transform_1, window_bounds = array<i64: 32, 128>}, {pipeline_mode = #tpu.pipeline_mode<synchronous>, transform_indices = @transform_2, window_bounds = array<i64: 3, 128>}, {transform_indices = @transform_3, window_bounds = array<i64: 16, 128>}]} {
    %c0 = arith.constant 0 : index
    %c0_0 = arith.constant 0 : index
    %0 = vector.load %arg1[%c0, %c0_0] : memref<16x32xf32, #tpu.memory_space<vmem>>, vector<16x32xf32>
    %1 = arith.truncf %0 : vector<16x32xf32> to vector<16x32xbf16>
    %c0_1 = arith.constant 0 : index
    %c0_2 = arith.constant 0 : index
    %2 = vector.load %arg2[%c0_1, %c0_2] : memref<32x128xbf16, #tpu.memory_space<vmem>>, vector<32x128xbf16>
    %cst = arith.constant dense<0.000000e+00> : vector<16x128xf32>
    %3 = tpu.matmul %1, %2, %cst {dimension_numbers = #tpu.dot_dimension_numbers<[1], [0], [0], [1], [0, 0, 1, 1], [], []>} : vector<16x32xbf16>, vector<32x128xbf16>, vector<16x128xf32> -> vector<16x128xf32>
    %c0_3 = arith.constant 0 : index
    %c0_4 = arith.constant 0 : index
    %4 = vector.load %arg3[%c0_3, %c0_4] : memref<3x128xf32, #tpu.memory_space<vmem>>, vector<3x128xf32>
    %5 = vector.extract_strided_slice %4 {offsets = [0, 0], sizes = [1, 128], strides = [1, 1]} : vector<3x128xf32> to vector<1x128xf32>
    %6 = vector.extract_strided_slice %4 {offsets = [1, 0], sizes = [1, 128], strides = [1, 1]} : vector<3x128xf32> to vector<1x128xf32>
    %7 = vector.extract_strided_slice %4 {offsets = [2, 0], sizes = [1, 128], strides = [1, 1]} : vector<3x128xf32> to vector<1x128xf32>
    %8 = vector.broadcast %5 : vector<1x128xf32> to vector<16x128xf32>
    %9 = arith.addf %3, %8 : vector<16x128xf32>
    %cst_5 = arith.constant dense<0.000000e+00> : vector<16xf32>
    %10 = vector.multi_reduction <add>, %9, %cst_5 [1] : vector<16x128xf32> to vector<16xf32>
    %11 = vector.shape_cast %10 : vector<16xf32> to vector<16x1xf32>
    %cst_6 = arith.constant 3.125000e-02 : f32
    %12 = vector.broadcast %cst_6 : f32 to vector<16x1xf32>
    %13 = arith.mulf %11, %12 : vector<16x1xf32>
    %14 = vector.broadcast %13 : vector<16x1xf32> to vector<16x128xf32>
    %15 = arith.subf %9, %14 : vector<16x128xf32>
    %16 = arith.mulf %15, %15 : vector<16x128xf32>
    %cst_7 = arith.constant dense<0.000000e+00> : vector<16xf32>
    %17 = vector.multi_reduction <add>, %16, %cst_7 [1] : vector<16x128xf32> to vector<16xf32>
    %18 = vector.shape_cast %17 : vector<16xf32> to vector<16x1xf32>
    %19 = arith.mulf %13, %13 : vector<16x1xf32>
    %cst_8 = arith.constant 9.600000e+01 : f32
    %20 = vector.broadcast %cst_8 : f32 to vector<16x1xf32>
    %21 = arith.mulf %20, %19 : vector<16x1xf32>
    %22 = arith.subf %18, %21 : vector<16x1xf32>
    %cst_9 = arith.constant 0.0322580636 : f32
    %23 = vector.broadcast %cst_9 : f32 to vector<16x1xf32>
    %24 = arith.mulf %22, %23 : vector<16x1xf32>
    %25 = math.sqrt %24 : vector<16x1xf32>
    %cst_10 = arith.constant 9.99999997E-7 : f32
    %26 = vector.broadcast %cst_10 : f32 to vector<16x1xf32>
    %27 = arith.addf %25, %26 : vector<16x1xf32>
    %cst_11 = arith.constant 1.000000e+00 : f32
    %28 = vector.broadcast %cst_11 : f32 to vector<16x1xf32>
    %29 = arith.divf %28, %27 : vector<16x1xf32>
    %30 = vector.broadcast %29 : vector<16x1xf32> to vector<16x128xf32>
    %31 = arith.mulf %15, %30 : vector<16x128xf32>
    %32 = vector.broadcast %6 : vector<1x128xf32> to vector<16x128xf32>
    %33 = arith.mulf %32, %31 : vector<16x128xf32>
    %34 = vector.broadcast %7 : vector<1x128xf32> to vector<16x128xf32>
    %35 = arith.addf %33, %34 : vector<16x128xf32>
    %36 = arith.negf %35 : vector<16x128xf32>
    %37 = math.exp %36 : vector<16x128xf32>
    %cst_12 = arith.constant 1.000000e+00 : f32
    %38 = vector.broadcast %cst_12 : f32 to vector<16x128xf32>
    %39 = arith.addf %38, %37 : vector<16x128xf32>
    %40 = arith.divf %38, %39 : vector<16x128xf32>
    %41 = arith.mulf %35, %40 : vector<16x128xf32>
    %c0_13 = arith.constant 0 : index
    %c0_14 = arith.constant 0 : index
    %42 = vector.load %arg4[%c0_13, %c0_14] : memref<16x128xf32, #tpu.memory_space<vmem>>, vector<16x128xf32>
    tpu.vector_store %arg4[%c0_13, %c0_14], %41 {strides = array<i32>} : memref<16x128xf32, #tpu.memory_space<vmem>>, vector<16x128xf32>,
    return
  }
  func.func @transform_0(%arg0: i32) -> (i32, i32) {
    %c0_i32 = arith.constant 0 : i32
    %c0_i32_0 = arith.constant 0 : i32
    return %arg0, %c0_i32 : i32, i32
  }
  func.func @transform_1(%arg0: i32) -> (i32, i32) {
    %c0_i32 = arith.constant 0 : i32
    %c0_i32_0 = arith.constant 0 : i32
    %c0_i32_1 = arith.constant 0 : i32
    return %c0_i32, %c0_i32_0 : i32, i32
  }
  func.func @transform_2(%arg0: i32) -> (i32, i32) {
    %c0_i32 = arith.constant 0 : i32
    %c0_i32_0 = arith.constant 0 : i32
    %c0_i32_1 = arith.constant 0 : i32
    return %c0_i32, %c0_i32_0 : i32, i32
  }
  func.func @transform_3(%arg0: i32) -> (i32, i32) {
    %c0_i32 = arith.constant 0 : i32
    %c0_i32_0 = arith.constant 0 : i32
    return %arg0, %c0_i32 : i32, i32
  }
}

module attributes {stable_mosaic.version = 11 : i64} {
  func.func @kernel(%arg0: i32, %arg1: memref<16x32xf32, #tpu.memory_space<vmem>>, %arg2: memref<32x128xbf16, #tpu.memory_space<vmem>>, %arg3: memref<3x128xf32, #tpu.memory_space<vmem>>, %arg4: memref<16x128xf32, #tpu.memory_space<vmem>>) attributes {dimension_semantics = [#tpu.dimension_semantics<parallel>], iteration_bounds = array<i64: 1>, scalar_prefetch = 0 : i64, scratch_operands = 0 : i64, tpu.core_type = #tpu.core_type<tc>, window_params = [{transform_indices = @transform_0, window_bounds = array<i64: 16, 32>}, {pipeline_mode = #tpu.pipeline_mode<synchronous>, transform_indices = @transform_1, window_bounds = array<i64: 32, 128>}, {pipeline_mode = #tpu.pipeline_mode<synchronous>, transform_indices = @transform_2, window_bounds = array<i64: 3, 128>}, {transform_indices = @transform_3, window_bounds = array<i64: 16, 128>}]} {
    %c0 = arith.constant 0 : index
    %c0_0 = arith.constant 0 : index
    %0 = vector.load %arg1[%c0, %c0_0] : memref<16x32xf32, #tpu.memory_space<vmem>>, vector<16x32xf32>
    %1 = arith.truncf %0 : vector<16x32xf32> to vector<16x32xbf16>
    %c0_1 = arith.constant 0 : index
    %c0_2 = arith.constant 0 : index
    %2 = vector.load %arg2[%c0_1, %c0_2] : memref<32x128xbf16, #tpu.memory_space<vmem>>, vector<32x128xbf16>
    %cst = arith.constant dense<0.000000e+00> : vector<16x128xf32>
    %3 = tpu.matmul %1, %2, %cst {dimension_numbers = #tpu.dot_dimension_numbers<[1], [0], [0], [1], [0, 0, 1, 1], [], []>} : vector<16x32xbf16>, vector<32x128xbf16>, vector<16x128xf32> -> vector<16x128xf32>
    %c0_3 = arith.constant 0 : index
    %c0_4 = arith.constant 0 : index
    %4 = vector.load %arg3[%c0_3, %c0_4] : memref<3x128xf32, #tpu.memory_space<vmem>>, vector<3x128xf32>
    %5 = vector.extract_strided_slice %4 {offsets = [0, 0], sizes = [1, 128], strides = [1, 1]} : vector<3x128xf32> to vector<1x128xf32>
    %6 = vector.extract_strided_slice %4 {offsets = [1, 0], sizes = [1, 128], strides = [1, 1]} : vector<3x128xf32> to vector<1x128xf32>
    %7 = vector.extract_strided_slice %4 {offsets = [2, 0], sizes = [1, 128], strides = [1, 1]} : vector<3x128xf32> to vector<1x128xf32>
    %8 = vector.broadcast %5 : vector<1x128xf32> to vector<16x128xf32>
    %9 = arith.addf %3, %8 : vector<16x128xf32>
    %cst_5 = arith.constant dense<0.000000e+00> : vector<16xf32>
    %10 = vector.multi_reduction <add>, %9, %cst_5 [1] : vector<16x128xf32> to vector<16xf32>
    %11 = vector.shape_cast %10 : vector<16xf32> to vector<16x1xf32>
    %cst_6 = arith.constant 3.125000e-02 : f32
    %12 = vector.broadcast %cst_6 : f32 to vector<16x1xf32>
    %13 = arith.mulf %11, %12 : vector<16x1xf32>
    %14 = vector.broadcast %13 : vector<16x1xf32> to vector<16x128xf32>
    %15 = arith.subf %9, %14 : vector<16x128xf32>
    %16 = arith.mulf %15, %15 : vector<16x128xf32>
    %cst_7 = arith.constant dense<0.000000e+00> : vector<16xf32>
    %17 = vector.multi_reduction <add>, %16, %cst_7 [1] : vector<16x128xf32> to vector<16xf32>
    %18 = vector.shape_cast %17 : vector<16xf32> to vector<16x1xf32>
    %19 = arith.mulf %13, %13 : vector<16x1xf32>
    %cst_8 = arith.constant 9.600000e+01 : f32
    %20 = vector.broadcast %cst_8 : f32 to vector<16x1xf32>
    %21 = arith.mulf %20, %19 : vector<16x1xf32>
    %22 = arith.subf %18, %21 : vector<16x1xf32>
    %cst_9 = arith.constant 0.0322580636 : f32
    %23 = vector.broadcast %cst_9 : f32 to vector<16x1xf32>
    %24 = arith.mulf %22, %23 : vector<16x1xf32>
    %25 = math.sqrt %24 : vector<16x1xf32>
    %cst_10 = arith.constant 9.99999997E-7 : f32
    %26 = vector.broadcast %cst_10 : f32 to vector<16x1xf32>
    %27 = arith.addf %25, %26 : vector<16x1xf32>
    %cst_11 = arith.constant 1.000000e+00 : f32
    %28 = vector.broadcast %cst_11 : f32 to vector<16x1xf32>
    %29 = arith.divf %28, %27 : vector<16x1xf32>
    %30 = vector.broadcast %29 : vector<16x1xf32> to vector<16x128xf32>
    %31 = arith.mulf %15, %30 : vector<16x128xf32>
    %32 = vector.broadcast %6 : vector<1x128xf32> to vector<16x128xf32>
    %33 = arith.mulf %32, %31 : vector<16x128xf32>
    %34 = vector.broadcast %7 : vector<1x128xf32> to vector<16x128xf32>
    %35 = arith.addf %33, %34 : vector<16x128xf32>
    %36 = arith.negf %35 : vector<16x128xf32>
    %37 = math.exp %36 : vector<16x128xf32>
    %cst_12 = arith.constant 1.000000e+00 : f32
    %38 = vector.broadcast %cst_12 : f32 to vector<16x128xf32>
    %39 = arith.addf %38, %37 : vector<16x128xf32>
    %40 = arith.divf %38, %39 : vector<16x128xf32>
    %41 = arith.mulf %35, %40 : vector<16x128xf32>
    %c0_13 = arith.constant 0 : index
    %c0_14 = arith.constant 0 : index
    %42 = vector.load %arg4[%c0_13, %c0_14] : memref<16x128xf32, #tpu.memory_space<vmem>>, vector<16x128xf32>
    tpu.vector_store %arg4[%c0_13, %c0_14], %41 {strides = array<i32>} : memref<16x128xf32, #tpu.memory_space<vmem>>, vector<16x128xf32>,
    return
  }
  func.func @transform_0(%arg0: i32) -> (i32, i32) {
    %c0_i32 = arith.constant 0 : i32
    %c0_i32_0 = arith.constant 0 : i32
    return %arg0, %c0_i32 : i32, i32
  }
  func.func @transform_1(%arg0: i32) -> (i32, i32) {
    %c0_i32 = arith.constant 0 : i32
    %c0_i32_0 = arith.constant 0 : i32
    %c0_i32_1 = arith.constant 0 : i32
    return %c0_i32, %c0_i32_0 : i32, i32
  }
  func.func @transform_2(%arg0: i32) -> (i32, i32) {
    %c0_i32 = arith.constant 0 : i32
    %c0_i32_0 = arith.constant 0 : i32
    %c0_i32_1 = arith.constant 0 : i32
    return %c0_i32, %c0_i32_0 : i32, i32
  }
  func.func @transform_3(%arg0: i32) -> (i32, i32) {
    %c0_i32 = arith.constant 0 : i32
    %c0_i32_0 = arith.constant 0 : i32
    return %arg0, %c0_i32 : i32, i32
  }
}

</mosaic_0001>

<llo_original>
// kernel: tpu_custom_call.1
$region0: #{tpu_custom_call.1}
  #allocation0 [shape = 'u32[]', space=smem, size = 0x4, offset = 0x4, fixed_abs, tag = 'smem constant byte address 0x4 - core index']
  #allocation1 [shape = 'u32[144,128]{1,0:T(1,128)}', space=vmem, size = 0x12000, scoped, tag = 'internal scratch']
  %s0 = inlined_call_operand.hbm [shape: f32[16,32], index: 0, kind: input, shape index: {}]
  %s1 = inlined_call_operand.hbm [shape: bf16[32,128], index: 1, kind: input, shape index: {}]
  %s2 = inlined_call_operand.hbm [shape: f32[3,128], index: 2, kind: input, shape index: {}]
  %s3 = inlined_call_operand.hbm [shape: f32[16,128], index: 3, kind: output, shape index: {}]
  %s4 = sld [smem:[#allocation0]]
  $region34: #{tpu_custom_call.1} parent=0
    _
  %s6 = ssub.s32 1, %s4
  %s7 = scalar_select 0, %s6, %s4
  $region1: #{tpu_custom_call.1} parent=0
    #allocation2 [shape = 'u8[8192]{0}', space=vmem, size = 0x2000, scoped, tag = 'input window, operand 0, single buffered']
    #allocation3 [shape = 's32[1]{0}', space=sflag, size = 0x4, scoped, tag = 'scoped memory for tpu_custom_call.1']
    #allocation4 [shape = 's32[1]{0}', space=sflag, size = 0x4, scoped, tag = 'scoped memory for tpu_custom_call.1']
    #allocation5 [shape = 'u8[8192]{0}', space=vmem, size = 0x2000, scoped, tag = 'input window, operand 1, single buffered']
    #allocation6 [shape = 's32[1]{0}', space=sflag, size = 0x4, scoped, tag = 'scoped memory for tpu_custom_call.1']
    #allocation7 [shape = 'u8[2048]{0}', space=vmem, size = 0x800, scoped, tag = 'input window, operand 2, single buffered']
    #allocation8 [shape = 'u8[8192]{0}', space=vmem, size = 0x2000, scoped, tag = 'output window, operand 0, single buffered']
    %8 = vsyncpa [#allocation3], 0
    %9 = vsyncpa [#allocation6], 0
    %10 = vsyncpa [#allocation4], 0
    // Predicated region
    $region2: #{tpu_custom_call.1} parent=1 // pred_check
      _
    $region3: #{tpu_custom_call.1} parent=1 // pred_check_branch
      %12 = sbr.rel (0) target = $region5
    $region4: #{tpu_custom_call.1} parent=1 // pred_region
      %s14 = ssub.s32 256, 256
      %15 = vsyncadd [#allocation3], %s14
      %s16 = sshll.u32 [#allocation2], 4
      %s17 = int_to_ptr.vmem [resolvable:$true] %s16
      %22 = dma.hbm_to_vmem [thread:$0]  %s0, 256, %s17, [#allocation3], 128, 128, 8
    $region5: #{tpu_custom_call.1} parent=1 // pred_fallthru
      _
    // Predicated region
    $region6: #{tpu_custom_call.1} parent=1 // pred_check
      _
    $region7: #{tpu_custom_call.1} parent=1 // pred_check_branch
      %24 = sbr.rel (0) target = $region9
    $region8: #{tpu_custom_call.1} parent=1 // pred_region
      %s26 = ssub.s32 256, 256
      %27 = vsyncadd [#allocation6], %s26
      %s28 = sshll.u32 [#allocation5], 4
      %s29 = int_to_ptr.vmem [resolvable:$true] %s28
      %34 = dma.hbm_to_vmem [thread:$0]  %s1, 256, %s29, [#allocation6], 64, 64, 4
    $region9: #{tpu_custom_call.1} parent=1 // pred_fallthru
      _
    // Predicated region
    $region10: #{tpu_custom_call.1} parent=1 // pred_check
      _
    $region11: #{tpu_custom_call.1} parent=1 // pred_check_branch
      %36 = sbr.rel (0) target = $region13
    $region12: #{tpu_custom_call.1} parent=1 // pred_region
      %s38 = ssub.s32 64, 64
      %39 = vsyncadd [#allocation6], %s38
      %s41 = sshll.u32 [#allocation7], 4
      %s42 = int_to_ptr.vmem [resolvable:$true] %s41
      %44 = dma.hbm_to_vmem [thread:$0]  %s2, 64, %s42, [#allocation6]
    $region13: #{tpu_custom_call.1} parent=1 // pred_fallthru
      _
    // Predicated region
    $region14: #{tpu_custom_call.1} parent=1 // pred_check
      _
    $region15: #{tpu_custom_call.1} parent=1 // pred_check_branch
      %46 = sbr.rel (0) target = $region17
    $region16: #{tpu_custom_call.1} parent=1 // pred_region
      %47 = dma.done [#allocation3], 256
    $region17: #{tpu_custom_call.1} parent=1 // pred_fallthru
      _
    // Predicated region
    $region18: #{tpu_custom_call.1} parent=1 // pred_check
      _
    $region19: #{tpu_custom_call.1} parent=1 // pred_check_branch
      %49 = sbr.rel (0) target = $region21
    $region20: #{tpu_custom_call.1} parent=1 // pred_region
      %50 = dma.done [#allocation6], 256
    $region21: #{tpu_custom_call.1} parent=1 // pred_fallthru
      _
    // Predicated region
    $region22: #{tpu_custom_call.1} parent=1 // pred_check
      _
    $region23: #{tpu_custom_call.1} parent=1 // pred_check_branch
      %52 = sbr.rel (0) target = $region25
    $region24: #{tpu_custom_call.1} parent=1 // pred_region
      %53 = dma.done [#allocation6], 64
    $region25: #{tpu_custom_call.1} parent=1 // pred_fallthru
      _
    %v55 = vld [vmem:[#allocation2] sm:$0xff]
    %v56 = vld [vmem:[#allocation2 + $0x8] sm:$0xff]
    %v57 = vpack.c.bf16 %v56, %v55
    %v58 = vld [vmem:[#allocation5] sm:$0xf]
    %v59 = vld [vmem:[#allocation5 + $0x4] sm:$0xf]
    %v60 = vld [vmem:[#allocation5 + $0x8] sm:$0xf]
    %v61 = vld [vmem:[#allocation5 + $0xc] sm:$0xf]
    %v62 = vld [vmem:[#allocation7] sm:$0x7]
    %v63 = vlaneseq
    %v64 = vshrl.u32 %v63, 7
    %v65 = vsub.s32 0, %v64
    %v66 = vrot.slane %v62, %v65
    %v71 = vunpack.c.l.b16 %v58
    %v72 = vunpack.c.l.b16 %v59
    %v73 = vunpack.c.l.b16 %v60
    %v74 = vunpack.c.l.b16 %v61
    %v75 = vpack.c.b16 %v72, %v71
    %v76 = vpack.c.b16 %v74, %v73
    %vm79 = vcmask 261120
    %v81 = vsel %vm79, %v57, 0
    %83 = vmatprep.subr.bf16.mxu0 0
    %84 = vmatpush1.bf16.msra.mxu0 0
    %85 = vmatprep.subr.bf16.mxu0 0
    %86 = vmatpush1.bf16.msra.mxu0 0
    %87 = vmatprep.subr.bf16.mxu0 0
    %88 = vmatpush1.bf16.msra.mxu0 0
    %89 = vmatprep.subr.bf16.mxu0 0
    %90 = vmatpush1.bf16.msra.mxu0 0
    %91 = vmatprep.subr.bf16.mxu0 0
    %92 = vmatpush1.bf16.msra.mxu0 0
    %93 = vmatprep.subr.bf16.mxu0 0
    %94 = vmatpush1.bf16.msra.mxu0 0
    %95 = vmatprep.subr.bf16.mxu0 0
    %96 = vmatpush1.bf16.msra.mxu0 %v76
    %97 = vmatprep.subr.bf16.mxu0 0
    %98 = vmatpush1.bf16.msra.mxu0 %v75
    %99 = vmatprep.subr.bf16.mxu0 0
    %100 = vmatpush2.bf16.msra.mxu0 0
    %101 = vmatprep.subr.bf16.mxu0 0
    %102 = vmatpush2.bf16.msra.mxu0 0
    %103 = vmatprep.subr.bf16.mxu0 0
    %104 = vmatpush2.bf16.msra.mxu0 0
    %105 = vmatprep.subr.bf16.mxu0 0
    %106 = vmatpush2.bf16.msra.mxu0 0
    %107 = vmatprep.subr.bf16.mxu0 0
    %108 = vmatpush2.bf16.msra.mxu0 0
    %109 = vmatprep.subr.bf16.mxu0 0
    %110 = vmatpush2.bf16.msra.mxu0 0
    %111 = vmatprep.subr.bf16.mxu0 0
    %112 = vmatpush2.bf16.msra.mxu0 0
    %113 = vmatprep.subr.bf16.mxu0 0
    %114 = vmatpush2.bf16.msra.mxu0 0
    %115 = vmatprep.mubr.bf16.mxu0 0
    %116 = vmatmul.mubr.bf16.gmra.mxu0 %v81
    %v117 = vpop.f32.mrf.mxu0
    %v118 = vadd.f32 %v66, %v117
    %v119 = vpop.f32.mrf.mxu0
    %v120 = vpop.f32.mrf.mxu0
    %v121 = vadd.f32 %v66, %v120
    %v122 = vpop.f32.mrf.mxu0
    %123 = vdwg.mxu0
    %124 = vadd.xlane.f32.xlu0 %v118
    %v125 = vpop.xlane.xlu0 %124
    %126 = vadd.xlane.f32.xlu0 %v121
    %v127 = vpop.xlane.xlu0 %126
    %v128 = vmul.f32 %v125, 0.03125
    %v129 = vmul.f32 %v127, 0.03125
    %v130 = vsub.f32 %v118, %v128
    %v131 = vsub.f32 %v121, %v129
    %v132 = vmul.f32 %v130, %v130
    %v133 = vmul.f32 %v131, %v131
    %134 = vadd.xlane.f32.xlu0 %v132
    %v135 = vpop.xlane.xlu0 %134
    %136 = vadd.xlane.f32.xlu0 %v133
    %v137 = vpop.xlane.xlu0 %136
    %v138 = vmul.f32 %v128, %v128
    %v139 = vmul.f32 %v129, %v129
    %v140 = vmul.f32 %v138, 96.0
    %v141 = vmul.f32 %v139, 96.0
    %v142 = vsub.f32 %v135, %v140
    %v143 = vsub.f32 %v137, %v141
    %v144 = vmul.f32 %v142, 0.032258064
    %v145 = vmul.f32 %v143, 0.032258064
    %v146 = vrsqrt.pop %v144
    %v147 = vmul.f32 %v144, %v146
    %vm148 = vcmp.eq.f32.partialorder %v144, inf
    %v149 = vsel %vm148, %v144, %v147
    %vm150 = vcmp.eq.f32.partialorder %v144, 0.0
    %v151 = vand.u32 %v144, 2147483648
    %v152 = vsel %vm150, %v151, %v149
    %v153 = vrsqrt.pop %v145
    %v154 = vmul.f32 %v145, %v153
    %vm155 = vcmp.eq.f32.partialorder %v145, inf
    %v156 = vsel %vm155, %v145, %v154
    %vm157 = vcmp.eq.f32.partialorder %v145, 0.0
    %v158 = vand.u32 %v145, 2147483648
    %v159 = vsel %vm157, %v158, %v156
    %v160 = vadd.f32 %v152, 1e-06
    %v161 = vadd.f32 %v159, 1e-06
    %v162 = vrcp.pop %v160
    %v163 = vmul.f32 1.0, %v162
    %v164 = vrcp.pop %v161
    %v165 = vmul.f32 1.0, %v164
    %v166 = vmul.f32 %v130, %v163
    %v167 = vmul.f32 %v131, %v165
    %v168 = vlaneseq
    %v169 = vshrl.u32 %v168, 7
    %v170 = vsub.s32 1, %v169
    %v171 = vrot.slane %v62, %v170
    %v172 = vmul.f32 %v171, %v166
    %v173 = vmul.f32 %v171, %v167
    %v174 = vlaneseq
    %v175 = vshrl.u32 %v174, 7
    %v176 = vsub.s32 2, %v175
    %v177 = vrot.slane %v62, %v176
    %v178 = vadd.f32 %v172, %v177
    %v179 = vadd.f32 %v173, %v177
    %v180 = vxor.u32 %v178, 2147483648
    %v181 = vxor.u32 %v179, 2147483648
    %v182 = vmul.f32 %v180, 1.442695
    %v183 = vpow.pop %v182
    %v184 = vmul.f32 %v181, 1.442695
    %v185 = vpow.pop %v184
    %v186 = vadd.f32 %v183, 1.0
    %v187 = vadd.f32 %v185, 1.0
    %v188 = vrcp.pop %v186
    %v189 = vmul.f32 1.0, %v188
    %v190 = vrcp.pop %v187
    %v191 = vmul.f32 1.0, %v190
    %v192 = vmul.f32 %v178, %v189
    %v193 = vmul.f32 %v179, %v191
    %194 = vst [vmem:[#allocation8] sm:$0xff] %v192
    %195 = vst [vmem:[#allocation8 + $0x8] sm:$0xff] %v193
    // Predicated region
    $region26: #{tpu_custom_call.1} parent=1 // pred_check
      _
    $region27: #{tpu_custom_call.1} parent=1 // pred_check_branch
      %197 = sbr.rel (0) target = $region29
    $region28: #{tpu_custom_call.1} parent=1 // pred_region
      %s199 = ssub.s32 256, 256
      %200 = vsyncadd [#allocation4], %s199
      %s201 = sshll.u32 [#allocation8], 4
      %s202 = int_to_ptr.vmem [resolvable:$true] %s201
      %207 = dma.vmem_to_hbm [thread:$0]  %s202, 256, %s3, [#allocation4], 128, 128, 8
    $region29: #{tpu_custom_call.1} parent=1 // pred_fallthru
      _
    // Predicated region
    $region30: #{tpu_custom_call.1} parent=1 // pred_check
      _
    $region31: #{tpu_custom_call.1} parent=1 // pred_check_branch
      %209 = sbr.rel (0) target = $region33
    $region32: #{tpu_custom_call.1} parent=1 // pred_region
      %210 = dma.done [#allocation4], 256
    $region33: #{tpu_custom_call.1} parent=1 // pred_fallthru
      _
    %211 = vsyncpa [#allocation3], 1
    %212 = vsyncpa [#allocation6], 1
    %213 = vsyncpa [#allocation4], 1

// kernel: tpu_custom_call.1
$region0: #{tpu_custom_call.1}
  #allocation0 [shape = 'u32[]', space=smem, size = 0x4, offset = 0x4, fixed_abs, tag = 'smem constant byte address 0x4 - core index']
  #allocation1 [shape = 'u32[144,128]{1,0:T(1,128)}', space=vmem, size = 0x12000, scoped, tag = 'internal scratch']
  %s0 = inlined_call_operand.hbm [shape: f32[16,32], index: 0, kind: input, shape index: {}]
  %s1 = inlined_call_operand.hbm [shape: bf16[32,128], index: 1, kind: input, shape index: {}]
  %s2 = inlined_call_operand.hbm [shape: f32[3,128], index: 2, kind: input, shape index: {}]
  %s3 = inlined_call_operand.hbm [shape: f32[16,128], index: 3, kind: output, shape index: {}]
  %s4 = sld [smem:[#allocation0]]
  $region34: #{tpu_custom_call.1} parent=0
    _
  %s6 = ssub.s32 1, %s4
  %s7 = scalar_select 0, %s6, %s4
  $region1: #{tpu_custom_call.1} parent=0
    #allocation2 [shape = 'u8[8192]{0}', space=vmem, size = 0x2000, scoped, tag = 'input window, operand 0, single buffered']
    #allocation3 [shape = 's32[1]{0}', space=sflag, size = 0x4, scoped, tag = 'scoped memory for tpu_custom_call.1']
    #allocation4 [shape = 's32[1]{0}', space=sflag, size = 0x4, scoped, tag = 'scoped memory for tpu_custom_call.1']
    #allocation5 [shape = 'u8[8192]{0}', space=vmem, size = 0x2000, scoped, tag = 'input window, operand 1, single buffered']
    #allocation6 [shape = 's32[1]{0}', space=sflag, size = 0x4, scoped, tag = 'scoped memory for tpu_custom_call.1']
    #allocation7 [shape = 'u8[2048]{0}', space=vmem, size = 0x800, scoped, tag = 'input window, operand 2, single buffered']
    #allocation8 [shape = 'u8[8192]{0}', space=vmem, size = 0x2000, scoped, tag = 'output window, operand 0, single buffered']
    %8 = vsyncpa [#allocation3], 0
    %9 = vsyncpa [#allocation6], 0
    %10 = vsyncpa [#allocation4], 0
    // Predicated region
    $region2: #{tpu_custom_call.1} parent=1 // pred_check
      _
    $region3: #{tpu_custom_call.1} parent=1 // pred_check_branch
      %12 = sbr.rel (0) target = $region5
    $region4: #{tpu_custom_call.1} parent=1 // pred_region
      %s14 = ssub.s32 256, 256
      %15 = vsyncadd [#allocation3], %s14
      %s16 = sshll.u32 [#allocation2], 4
      %s17 = int_to_ptr.vmem [resolvable:$true] %s16
      %22 = dma.hbm_to_vmem [thread:$0]  %s0, 256, %s17, [#allocation3], 128, 128, 8
    $region5: #{tpu_custom_call.1} parent=1 // pred_fallthru
      _
    // Predicated region
    $region6: #{tpu_custom_call.1} parent=1 // pred_check
      _
    $region7: #{tpu_custom_call.1} parent=1 // pred_check_branch
      %24 = sbr.rel (0) target = $region9
    $region8: #{tpu_custom_call.1} parent=1 // pred_region
      %s26 = ssub.s32 256, 256
      %27 = vsyncadd [#allocation6], %s26
      %s28 = sshll.u32 [#allocation5], 4
      %s29 = int_to_ptr.vmem [resolvable:$true] %s28
      %34 = dma.hbm_to_vmem [thread:$0]  %s1, 256, %s29, [#allocation6], 64, 64, 4
    $region9: #{tpu_custom_call.1} parent=1 // pred_fallthru
      _
    // Predicated region
    $region10: #{tpu_custom_call.1} parent=1 // pred_check
      _
    $region11: #{tpu_custom_call.1} parent=1 // pred_check_branch
      %36 = sbr.rel (0) target = $region13
    $region12: #{tpu_custom_call.1} parent=1 // pred_region
      %s38 = ssub.s32 64, 64
      %39 = vsyncadd [#allocation6], %s38
      %s41 = sshll.u32 [#allocation7], 4
      %s42 = int_to_ptr.vmem [resolvable:$true] %s41
      %44 = dma.hbm_to_vmem [thread:$0]  %s2, 64, %s42, [#allocation6]
    $region13: #{tpu_custom_call.1} parent=1 // pred_fallthru
      _
    // Predicated region
    $region14: #{tpu_custom_call.1} parent=1 // pred_check
      _
    $region15: #{tpu_custom_call.1} parent=1 // pred_check_branch
      %46 = sbr.rel (0) target = $region17
    $region16: #{tpu_custom_call.1} parent=1 // pred_region
      %47 = dma.done [#allocation3], 256
    $region17: #{tpu_custom_call.1} parent=1 // pred_fallthru
      _
    // Predicated region
    $region18: #{tpu_custom_call.1} parent=1 // pred_check
      _
    $region19: #{tpu_custom_call.1} parent=1 // pred_check_branch
      %49 = sbr.rel (0) target = $region21
    $region20: #{tpu_custom_call.1} parent=1 // pred_region
      %50 = dma.done [#allocation6], 256
    $region21: #{tpu_custom_call.1} parent=1 // pred_fallthru
      _
    // Predicated region
    $region22: #{tpu_custom_call.1} parent=1 // pred_check
      _
    $region23: #{tpu_custom_call.1} parent=1 // pred_check_branch
      %52 = sbr.rel (0) target = $region25
    $region24: #{tpu_custom_call.1} parent=1 // pred_region
      %53 = dma.done [#allocation6], 64
    $region25: #{tpu_custom_call.1} parent=1 // pred_fallthru
      _
    %v55 = vld [vmem:[#allocation2] sm:$0xff]
    %v56 = vld [vmem:[#allocation2 + $0x8] sm:$0xff]
    %v57 = vpack.c.bf16 %v56, %v55
    %v58 = vld [vmem:[#allocation5] sm:$0xf]
    %v59 = vld [vmem:[#allocation5 + $0x4] sm:$0xf]
    %v60 = vld [vmem:[#allocation5 + $0x8] sm:$0xf]
    %v61 = vld [vmem:[#allocation5 + $0xc] sm:$0xf]
    %v62 = vld [vmem:[#allocation7] sm:$0x7]
    %v63 = vlaneseq
    %v64 = vshrl.u32 %v63, 7
    %v65 = vsub.s32 0, %v64
    %v66 = vrot.slane %v62, %v65
    %v71 = vunpack.c.l.b16 %v58
    %v72 = vunpack.c.l.b16 %v59
    %v73 = vunpack.c.l.b16 %v60
    %v74 = vunpack.c.l.b16 %v61
    %v75 = vpack.c.b16 %v72, %v71
    %v76 = vpack.c.b16 %v74, %v73
    %vm79 = vcmask 261120
    %v81 = vsel %vm79, %v57, 0
    %83 = vmatprep.subr.bf16.mxu0 0
    %84 = vmatpush1.bf16.msra.mxu0 0
    %85 = vmatprep.subr.bf16.mxu0 0
    %86 = vmatpush1.bf16.msra.mxu0 0
    %87 = vmatprep.subr.bf16.mxu0 0
    %88 = vmatpush1.bf16.msra.mxu0 0
    %89 = vmatprep.subr.bf16.mxu0 0
    %90 = vmatpush1.bf16.msra.mxu0 0
    %91 = vmatprep.subr.bf16.mxu0 0
    %92 = vmatpush1.bf16.msra.mxu0 0
    %93 = vmatprep.subr.bf16.mxu0 0
    %94 = vmatpush1.bf16.msra.mxu0 0
    %95 = vmatprep.subr.bf16.mxu0 0
    %96 = vmatpush1.bf16.msra.mxu0 %v76
    %97 = vmatprep.subr.bf16.mxu0 0
    %98 = vmatpush1.bf16.msra.mxu0 %v75
    %99 = vmatprep.subr.bf16.mxu0 0
    %100 = vmatpush2.bf16.msra.mxu0 0
    %101 = vmatprep.subr.bf16.mxu0 0
    %102 = vmatpush2.bf16.msra.mxu0 0
    %103 = vmatprep.subr.bf16.mxu0 0
    %104 = vmatpush2.bf16.msra.mxu0 0
    %105 = vmatprep.subr.bf16.mxu0 0
    %106 = vmatpush2.bf16.msra.mxu0 0
    %107 = vmatprep.subr.bf16.mxu0 0
    %108 = vmatpush2.bf16.msra.mxu0 0
    %109 = vmatprep.subr.bf16.mxu0 0
    %110 = vmatpush2.bf16.msra.mxu0 0
    %111 = vmatprep.subr.bf16.mxu0 0
    %112 = vmatpush2.bf16.msra.mxu0 0
    %113 = vmatprep.subr.bf16.mxu0 0
    %114 = vmatpush2.bf16.msra.mxu0 0
    %115 = vmatprep.mubr.bf16.mxu0 0
    %116 = vmatmul.mubr.bf16.gmra.mxu0 %v81
    %v117 = vpop.f32.mrf.mxu0
    %v118 = vadd.f32 %v66, %v117
    %v119 = vpop.f32.mrf.mxu0
    %v120 = vpop.f32.mrf.mxu0
    %v121 = vadd.f32 %v66, %v120
    %v122 = vpop.f32.mrf.mxu0
    %123 = vdwg.mxu0
    %124 = vadd.xlane.f32.xlu0 %v118
    %v125 = vpop.xlane.xlu0 %124
    %126 = vadd.xlane.f32.xlu0 %v121
    %v127 = vpop.xlane.xlu0 %126
    %v128 = vmul.f32 %v125, 0.03125
    %v129 = vmul.f32 %v127, 0.03125
    %v130 = vsub.f32 %v118, %v128
    %v131 = vsub.f32 %v121, %v129
    %v132 = vmul.f32 %v130, %v130
    %v133 = vmul.f32 %v131, %v131
    %134 = vadd.xlane.f32.xlu0 %v132
    %v135 = vpop.xlane.xlu0 %134
    %136 = vadd.xlane.f32.xlu0 %v133
    %v137 = vpop.xlane.xlu0 %136
    %v138 = vmul.f32 %v128, %v128
    %v139 = vmul.f32 %v129, %v129
    %v140 = vmul.f32 %v138, 96.0
    %v141 = vmul.f32 %v139, 96.0
    %v142 = vsub.f32 %v135, %v140
    %v143 = vsub.f32 %v137, %v141
    %v144 = vmul.f32 %v142, 0.032258064
    %v145 = vmul.f32 %v143, 0.032258064
    %v146 = vrsqrt.pop %v144
    %v147 = vmul.f32 %v144, %v146
    %vm148 = vcmp.eq.f32.partialorder %v144, inf
    %v149 = vsel %vm148, %v144, %v147
    %vm150 = vcmp.eq.f32.partialorder %v144, 0.0
    %v151 = vand.u32 %v144, 2147483648
    %v152 = vsel %vm150, %v151, %v149
    %v153 = vrsqrt.pop %v145
    %v154 = vmul.f32 %v145, %v153
    %vm155 = vcmp.eq.f32.partialorder %v145, inf
    %v156 = vsel %vm155, %v145, %v154
    %vm157 = vcmp.eq.f32.partialorder %v145, 0.0
    %v158 = vand.u32 %v145, 2147483648
    %v159 = vsel %vm157, %v158, %v156
    %v160 = vadd.f32 %v152, 1e-06
    %v161 = vadd.f32 %v159, 1e-06
    %v162 = vrcp.pop %v160
    %v163 = vmul.f32 1.0, %v162
    %v164 = vrcp.pop %v161
    %v165 = vmul.f32 1.0, %v164
    %v166 = vmul.f32 %v130, %v163
    %v167 = vmul.f32 %v131, %v165
    %v168 = vlaneseq
    %v169 = vshrl.u32 %v168, 7
    %v170 = vsub.s32 1, %v169
    %v171 = vrot.slane %v62, %v170
    %v172 = vmul.f32 %v171, %v166
    %v173 = vmul.f32 %v171, %v167
    %v174 = vlaneseq
    %v175 = vshrl.u32 %v174, 7
    %v176 = vsub.s32 2, %v175
    %v177 = vrot.slane %v62, %v176
    %v178 = vadd.f32 %v172, %v177
    %v179 = vadd.f32 %v173, %v177
    %v180 = vxor.u32 %v178, 2147483648
    %v181 = vxor.u32 %v179, 2147483648
    %v182 = vmul.f32 %v180, 1.442695
    %v183 = vpow.pop %v182
    %v184 = vmul.f32 %v181, 1.442695
    %v185 = vpow.pop %v184
    %v186 = vadd.f32 %v183, 1.0
    %v187 = vadd.f32 %v185, 1.0
    %v188 = vrcp.pop %v186
    %v189 = vmul.f32 1.0, %v188
    %v190 = vrcp.pop %v187
    %v191 = vmul.f32 1.0, %v190
    %v192 = vmul.f32 %v178, %v189
    %v193 = vmul.f32 %v179, %v191
    %194 = vst [vmem:[#allocation8] sm:$0xff] %v192
    %195 = vst [vmem:[#allocation8 + $0x8] sm:$0xff] %v193
    // Predicated region
    $region26: #{tpu_custom_call.1} parent=1 // pred_check
      _
    $region27: #{tpu_custom_call.1} parent=1 // pred_check_branch
      %197 = sbr.rel (0) target = $region29
    $region28: #{tpu_custom_call.1} parent=1 // pred_region
      %s199 = ssub.s32 256, 256
      %200 = vsyncadd [#allocation4], %s199
      %s201 = sshll.u32 [#allocation8], 4
      %s202 = int_to_ptr.vmem [resolvable:$true] %s201
      %207 = dma.vmem_to_hbm [thread:$0]  %s202, 256, %s3, [#allocation4], 128, 128, 8
    $region29: #{tpu_custom_call.1} parent=1 // pred_fallthru
      _
    // Predicated region
    $region30: #{tpu_custom_call.1} parent=1 // pred_check
      _
    $region31: #{tpu_custom_call.1} parent=1 // pred_check_branch
      %209 = sbr.rel (0) target = $region33
    $region32: #{tpu_custom_call.1} parent=1 // pred_region
      %210 = dma.done [#allocation4], 256
    $region33: #{tpu_custom_call.1} parent=1 // pred_fallthru
      _
    %211 = vsyncpa [#allocation3], 1
    %212 = vsyncpa [#allocation6], 1
    %213 = vsyncpa [#allocation4], 1

</llo_original>
